<compile_context>
chip_gen: v7x
topology: tpu7x:2x2x1
jax: 0.10.0
libtpu: 0.0.40
codegen_flags: <defaults>
</compile_context>

<pallas_src>
import functools

import jax
import jax.numpy as jnp
from jax.experimental import pallas as pl
from jax.experimental.pallas import tpu as pltpu

_LANE = 128
_SUBLANE = 8
_NEG_BIG = -1e30  # bias for padded action columns -> exp underflows to exactly 0


def _round_up(n, m):
    return ((n + m - 1) // m) * m


def _policy_kernel(x_ref, w1_ref, b1_ref, w2_ref, b2_ref, out_ref):
    # fc1 + ReLU (MXU matmul, f32 accumulate).  Hidden dim stays unpadded.
    h = jnp.dot(x_ref[...], w1_ref[...], preferred_element_type=jnp.float32)
    h = jnp.maximum(h + b1_ref[...], 0.0)                        # (tb, H)

    # fc2 over the lane-padded action dim; padded columns carry a -1e30 bias,
    # so exp() drives their probability to exactly 0 and they never affect denom.
    logits = jnp.dot(h, w2_ref[...], preferred_element_type=jnp.float32)
    logits = logits + b2_ref[...]                                # (tb, Ap)

    # numerically-stable softmax along the lane-dense last dim
    m = jnp.max(logits, axis=-1, keepdims=True)
    e = jnp.exp(logits - m)
    denom = jnp.sum(e, axis=-1, keepdims=True)
    probs = e / denom            # exact divide: rows sum to 1 to f32 precision

    # compact store: only the real action columns (out block last dim == A)
    out_ref[...] = probs[:, : out_ref.shape[-1]].astype(out_ref.dtype)


def prepare_params(w1, b1, w2, b2):
    """Pad the fc2 weight/bias to 128 lanes ONCE (outside the per-step forward).

    Layout (transposed vs torch.nn.Linear so the kernel computes x @ W + b):
      w1: (state_dim, hidden), b1: (hidden,), w2: (hidden, action), b2: (action,)
    """
    f32 = jnp.float32
    S, H = w1.shape
    A = w2.shape[1]
    Ap = _round_up(A, _LANE)
    w1p = w1.astype(f32)
    b1p = b1.reshape(1, H).astype(f32)
    w2p = jnp.zeros((H, Ap), f32).at[:, :A].set(w2.astype(f32))
    b2p = jnp.full((1, Ap), _NEG_BIG, f32).at[:, :A].set(b2.reshape(1, A).astype(f32))
    return w1p, b1p, w2p, b2p


@functools.partial(jax.jit, static_argnames=("action_dim", "block_b"))
def categorical_policy_forward(x, w1p, b1p, w2p, b2p, *, action_dim, block_b=512):
    """x: (B, state_dim) -> probs: (B, action_dim) f32 (each row sums to 1)."""
    B, S = x.shape
    H = w1p.shape[1]
    Ap = w2p.shape[1]
    A = action_dim

    # Batch tile: as large as block_b, but sized so big batches get >= 2 grid
    # steps (the "parallel" axis shards across v7x's two TensorCores).  The
    # batch itself is NOT padded: Pallas clips the ragged last block.
    block_b = max(_SUBLANE, (block_b // _SUBLANE) * _SUBLANE)
    tb = min(block_b, max(_SUBLANE, _round_up((B + 1) // 2, _SUBLANE)))
    grid = (B + tb - 1) // tb

    cost = pl.CostEstimate(
        flops=2 * B * (S * H + H * Ap),
        transcendentals=B * Ap,
        bytes_accessed=4 * (B * S + S * H + H + H * Ap + Ap + B * A),
    )

    return pl.pallas_call(
        _policy_kernel,
        out_shape=jax.ShapeDtypeStruct((B, A), jnp.float32),
        grid=(grid,),
        in_specs=[
            pl.BlockSpec((tb, S), lambda i: (i, 0)),   # batch-tiled input (pipelined)
            pl.BlockSpec((S, H), lambda i: (0, 0)),    # weights stay VMEM-resident
            pl.BlockSpec((1, H), lambda i: (0, 0)),
            pl.BlockSpec((H, Ap), lambda i: (0, 0)),
            pl.BlockSpec((1, Ap), lambda i: (0, 0)),
        ],
        out_specs=pl.BlockSpec((tb, A), lambda i: (i, 0)),   # compact (B, A) output
        compiler_params=pltpu.CompilerParams(
            dimension_semantics=("parallel",),
        ),
        cost_estimate=cost,
    )(x.astype(jnp.float32), w1p, b1p, w2p, b2p)


def init_params(key, state_dim, action_dim, hidden_dim):
    # Deterministic init matching nn.Linear's default U(-1/sqrt(fan_in), 1/sqrt(fan_in)).
    k1, k2, k3, k4 = jax.random.split(key, 4)
    bound1 = 1.0 / (state_dim ** 0.5)
    bound2 = 1.0 / (hidden_dim ** 0.5)
    w1 = jax.random.uniform(k1, (state_dim, hidden_dim), jnp.float32, -bound1, bound1)
    b1 = jax.random.uniform(k2, (hidden_dim,), jnp.float32, -bound1, bound1)
    w2 = jax.random.uniform(k3, (hidden_dim, action_dim), jnp.float32, -bound2, bound2)
    b2 = jax.random.uniform(k4, (action_dim,), jnp.float32, -bound2, bound2)
    return w1, b1, w2, b2


if __name__ == "__main__":
    key = jax.random.PRNGKey(0)
    kx, kp = jax.random.split(key)

    batch, state_dim, action_dim, hidden_dim = 8, 16, 8, 32
    x = jax.random.normal(kx, (batch, state_dim), jnp.float32)
    w1, b1, w2, b2 = init_params(kp, state_dim, action_dim, hidden_dim)
    params = prepare_params(w1, b1, w2, b2)   # pad fc2 once, reuse every step

    def reference(xx):
        h = jnp.maximum(xx @ w1 + b1, 0.0)
        return jax.nn.softmax(h @ w2 + b2, axis=-1)

    probs = categorical_policy_forward(x, *params, action_dim=action_dim)
    jax.block_until_ready(probs)
    assert probs.shape == (batch, action_dim)
    assert jnp.allclose(probs, reference(x), atol=1e-4), "mismatch vs reference"
    assert jnp.allclose(jnp.sum(probs, axis=-1), 1.0, atol=1e-4), "rows must sum to 1"

    # also exercise a multi-step grid with a ragged last block (B=300 -> tb=152, 2 steps)
    x_big = jax.random.normal(jax.random.PRNGKey(1), (300, state_dim), jnp.float32)
    probs_big = categorical_policy_forward(x_big, *params, action_dim=action_dim)
    jax.block_until_ready(probs_big)
    assert probs_big.shape == (300, action_dim)
    assert jnp.allclose(probs_big, reference(x_big), atol=1e-4)
    assert jnp.allclose(jnp.sum(probs_big, axis=-1), 1.0, atol=1e-4)

    # TODO(synk): select_action (Categorical sampling / log_prob) stays in plain
    # JAX at the call site; it could be fused into the kernel via Gumbel-max with
    # pltpu.prng_seed + pltpu.prng_random_bits, emitting (B,1) int32 actions and
    # (B,1) f32 log-probs for an even smaller HBM output.
    print("KERNEL_OK")
</pallas_src>

<mosaic_0001>
module attributes {stable_mosaic.version = 11 : i64} {
  func.func @_policy_kernel(%arg0: i32, %arg1: memref<8x16xf32, #tpu.memory_space<vmem>>, %arg2: memref<16x32xf32, #tpu.memory_space<vmem>>, %arg3: memref<1x32xf32, #tpu.memory_space<vmem>>, %arg4: memref<32x128xf32, #tpu.memory_space<vmem>>, %arg5: memref<1x128xf32, #tpu.memory_space<vmem>>, %arg6: memref<8x8xf32, #tpu.memory_space<vmem>>) attributes {dimension_semantics = [#tpu.dimension_semantics<parallel>], iteration_bounds = array<i64: 1>, scalar_prefetch = 0 : i64, scratch_operands = 0 : i64, tpu.core_type = #tpu.core_type<tc>, window_params = [{transform_indices = @transform_0, window_bounds = array<i64: 8, 16>}, {pipeline_mode = #tpu.pipeline_mode<synchronous>, transform_indices = @transform_1, window_bounds = array<i64: 16, 32>}, {pipeline_mode = #tpu.pipeline_mode<synchronous>, transform_indices = @transform_2, window_bounds = array<i64: 1, 32>}, {pipeline_mode = #tpu.pipeline_mode<synchronous>, transform_indices = @transform_3, window_bounds = array<i64: 32, 128>}, {pipeline_mode = #tpu.pipeline_mode<synchronous>, transform_indices = @transform_4, window_bounds = array<i64: 1, 128>}, {transform_indices = @transform_5, window_bounds = array<i64: 8, 8>}]} {
    %c0 = arith.constant 0 : index
    %c0_0 = arith.constant 0 : index
    %0 = vector.load %arg1[%c0, %c0_0] : memref<8x16xf32, #tpu.memory_space<vmem>>, vector<8x16xf32>
    %c0_1 = arith.constant 0 : index
    %c0_2 = arith.constant 0 : index
    %1 = vector.load %arg2[%c0_1, %c0_2] : memref<16x32xf32, #tpu.memory_space<vmem>>, vector<16x32xf32>
    %cst = arith.constant dense<0.000000e+00> : vector<8x32xf32>
    %2 = tpu.matmul %0, %1, %cst {dimension_numbers = #tpu.dot_dimension_numbers<[1], [0], [0], [1], [0, 0, 1, 1], [], []>} : vector<8x16xf32>, vector<16x32xf32>, vector<8x32xf32> -> vector<8x32xf32>
    %c0_3 = arith.constant 0 : index
    %c0_4 = arith.constant 0 : index
    %3 = vector.load %arg3[%c0_3, %c0_4] : memref<1x32xf32, #tpu.memory_space<vmem>>, vector<1x32xf32>
    %4 = vector.broadcast %3 : vector<1x32xf32> to vector<8x32xf32>
    %5 = arith.addf %2, %4 : vector<8x32xf32>
    %cst_5 = arith.constant 0.000000e+00 : f32
    %6 = vector.broadcast %cst_5 : f32 to vector<8x32xf32>
    %7 = arith.maximumf %5, %6 : vector<8x32xf32>
    %c0_6 = arith.constant 0 : index
    %c0_7 = arith.constant 0 : index
    %8 = vector.load %arg4[%c0_6, %c0_7] : memref<32x128xf32, #tpu.memory_space<vmem>>, vector<32x128xf32>
    %cst_8 = arith.constant dense<0.000000e+00> : vector<8x128xf32>
    %9 = tpu.matmul %7, %8, %cst_8 {dimension_numbers = #tpu.dot_dimension_numbers<[1], [0], [0], [1], [0, 0, 1, 1], [], []>} : vector<8x32xf32>, vector<32x128xf32>, vector<8x128xf32> -> vector<8x128xf32>
    %c0_9 = arith.constant 0 : index
    %c0_10 = arith.constant 0 : index
    %10 = vector.load %arg5[%c0_9, %c0_10] : memref<1x128xf32, #tpu.memory_space<vmem>>, vector<1x128xf32>
    %11 = vector.broadcast %10 : vector<1x128xf32> to vector<8x128xf32>
    %12 = arith.addf %9, %11 : vector<8x128xf32>
    %cst_11 = arith.constant dense<0xFF800000> : vector<8xf32>
    %13 = vector.multi_reduction <maximumf>, %12, %cst_11 [1] : vector<8x128xf32> to vector<8xf32>
    %14 = vector.shape_cast %13 : vector<8xf32> to vector<8x1xf32>
    %15 = vector.broadcast %14 : vector<8x1xf32> to vector<8x128xf32>
    %16 = arith.subf %12, %15 : vector<8x128xf32>
    %17 = math.exp %16 : vector<8x128xf32>
    %cst_12 = arith.constant dense<0.000000e+00> : vector<8xf32>
    %18 = vector.multi_reduction <add>, %17, %cst_12 [1] : vector<8x128xf32> to vector<8xf32>
    %19 = vector.shape_cast %18 : vector<8xf32> to vector<8x1xf32>
    %20 = vector.broadcast %19 : vector<8x1xf32> to vector<8x128xf32>
    %21 = arith.divf %17, %20 : vector<8x128xf32>
    %22 = vector.extract_strided_slice %21 {offsets = [0, 0], sizes = [8, 8], strides = [1, 1]} : vector<8x128xf32> to vector<8x8xf32>
    %c0_13 = arith.constant 0 : index
    %c0_14 = arith.constant 0 : index
    %23 = vector.load %arg6[%c0_13, %c0_14] : memref<8x8xf32, #tpu.memory_space<vmem>>, vector<8x8xf32>
    tpu.vector_store %arg6[%c0_13, %c0_14], %22 {strides = array<i32>} : memref<8x8xf32, #tpu.memory_space<vmem>>, vector<8x8xf32>,
    return
  }
  func.func @transform_0(%arg0: i32) -> (i32, i32) {
    %c0_i32 = arith.constant 0 : i32
    %c0_i32_0 = arith.constant 0 : i32
    return %arg0, %c0_i32 : i32, i32
  }
  func.func @transform_1(%arg0: i32) -> (i32, i32) {
    %c0_i32 = arith.constant 0 : i32
    %c0_i32_0 = arith.constant 0 : i32
    %c0_i32_1 = arith.constant 0 : i32
    return %c0_i32, %c0_i32_0 : i32, i32
  }
  func.func @transform_2(%arg0: i32) -> (i32, i32) {
    %c0_i32 = arith.constant 0 : i32
    %c0_i32_0 = arith.constant 0 : i32
    %c0_i32_1 = arith.constant 0 : i32
    return %c0_i32, %c0_i32_0 : i32, i32
  }
  func.func @transform_3(%arg0: i32) -> (i32, i32) {
    %c0_i32 = arith.constant 0 : i32
    %c0_i32_0 = arith.constant 0 : i32
    %c0_i32_1 = arith.constant 0 : i32
    return %c0_i32, %c0_i32_0 : i32, i32
  }
  func.func @transform_4(%arg0: i32) -> (i32, i32) {
    %c0_i32 = arith.constant 0 : i32
    %c0_i32_0 = arith.constant 0 : i32
    %c0_i32_1 = arith.constant 0 : i32
    return %c0_i32, %c0_i32_0 : i32, i32
  }
  func.func @transform_5(%arg0: i32) -> (i32, i32) {
    %c0_i32 = arith.constant 0 : i32
    %c0_i32_0 = arith.constant 0 : i32
    return %arg0, %c0_i32 : i32, i32
  }
}

</mosaic_0001>

<llo_original>
// kernel: categorical_policy_forward.1
$region0: #{categorical_policy_forward.1}
  #allocation0 [shape = 'u32[]', space=smem, size = 0x4, offset = 0x4, fixed_abs, tag = 'smem constant byte address 0x4 - core index']
  #allocation1 [shape = 'u32[144,128]{1,0:T(1,128)}', space=vmem, size = 0x12000, scoped, tag = 'internal scratch']
  %s0 = inlined_call_operand.hbm [shape: f32[8,16], index: 0, kind: input, shape index: {}]
  %s1 = inlined_call_operand.hbm [shape: f32[16,32], index: 1, kind: input, shape index: {}]
  %s2 = inlined_call_operand.vmem [shape: f32[1,32], index: 2, kind: input, shape index: {}]
  %s3 = inlined_call_operand.hbm [shape: f32[32,128], index: 3, kind: input, shape index: {}]
  %s4 = inlined_call_operand.vmem [shape: f32[1,128], index: 4, kind: input, shape index: {}]
  %s5 = inlined_call_operand.hbm [shape: f32[8,8], index: 5, kind: output, shape index: {}]
  %s6 = sld [smem:[#allocation0]]
  $region42: #{categorical_policy_forward.1} parent=0
    _
  %s8 = ssub.s32 1, %s6
  %s9 = scalar_select 0, %s8, %s6
  $region1: #{categorical_policy_forward.1} parent=0
    #allocation2 [shape = 'u8[4096]{0}', space=vmem, size = 0x1000, scoped, tag = 'input window, operand 0, single buffered']
    #allocation3 [shape = 's32[1]{0}', space=sflag, size = 0x4, scoped, tag = 'scoped memory for categorical_policy_forward.1']
    #allocation4 [shape = 's32[1]{0}', space=sflag, size = 0x4, scoped, tag = 'scoped memory for categorical_policy_forward.1']
    #allocation5 [shape = 'u8[8192]{0}', space=vmem, size = 0x2000, scoped, tag = 'input window, operand 1, single buffered']
    #allocation6 [shape = 's32[1]{0}', space=sflag, size = 0x4, scoped, tag = 'scoped memory for categorical_policy_forward.1']
    #allocation7 [shape = 'u8[16384]{0}', space=vmem, size = 0x4000, scoped, tag = 'input window, operand 3, single buffered']
    #allocation8 [shape = 'u8[4096]{0}', space=vmem, size = 0x1000, scoped, tag = 'output window, operand 0, single buffered']
    %10 = vsyncpa [#allocation3], 0
    %11 = vsyncpa [#allocation6], 0
    %12 = vsyncpa [#allocation4], 0
    // Predicated region
    $region2: #{categorical_policy_forward.1} parent=1 // pred_check
      _
    $region3: #{categorical_policy_forward.1} parent=1 // pred_check_branch
      %14 = sbr.rel (0) target = $region5
    $region4: #{categorical_policy_forward.1} parent=1 // pred_region
      %s16 = ssub.s32 128, 128
      %17 = vsyncadd [#allocation3], %s16
      %s19 = sshll.u32 [#allocation2], 4
      %s20 = int_to_ptr.vmem [resolvable:$true] %s19
      %22 = dma.hbm_to_vmem [thread:$0]  %s0, 128, %s20, [#allocation3]
    $region5: #{categorical_policy_forward.1} parent=1 // pred_fallthru
      _
    // Predicated region
    $region6: #{categorical_policy_forward.1} parent=1 // pred_check
      _
    $region7: #{categorical_policy_forward.1} parent=1 // pred_check_branch
      %24 = sbr.rel (0) target = $region9
    $region8: #{categorical_policy_forward.1} parent=1 // pred_region
      %s26 = ssub.s32 256, 256
      %27 = vsyncadd [#allocation6], %s26
      %s28 = sshll.u32 [#allocation5], 4
      %s29 = int_to_ptr.vmem [resolvable:$true] %s28
      %34 = dma.hbm_to_vmem [thread:$0]  %s1, 256, %s29, [#allocation6], 128, 128, 8
    $region9: #{categorical_policy_forward.1} parent=1 // pred_fallthru
      _
    // Predicated region
    $region10: #{categorical_policy_forward.1} parent=1 // pred_check
      _
    $region11: #{categorical_policy_forward.1} parent=1 // pred_check_branch
      %36 = sbr.rel (0) target = $region13
    $region12: #{categorical_policy_forward.1} parent=1 // pred_region
      _
    $region13: #{categorical_policy_forward.1} parent=1 // pred_fallthru
      _
    // Predicated region
    $region14: #{categorical_policy_forward.1} parent=1 // pred_check
      _
    $region15: #{categorical_policy_forward.1} parent=1 // pred_check_branch
      %38 = sbr.rel (0) target = $region17
    $region16: #{categorical_policy_forward.1} parent=1 // pred_region
      %s40 = ssub.s32 512, 512
      %41 = vsyncadd [#allocation6], %s40
      %s42 = sshll.u32 [#allocation7], 4
      %s43 = int_to_ptr.vmem [resolvable:$true] %s42
      %48 = dma.hbm_to_vmem [thread:$0]  %s3, 512, %s43, [#allocation6], 128, 128, 8
    $region17: #{categorical_policy_forward.1} parent=1 // pred_fallthru
      _
    // Predicated region
    $region18: #{categorical_policy_forward.1} parent=1 // pred_check
      _
    $region19: #{categorical_policy_forward.1} parent=1 // pred_check_branch
      %50 = sbr.rel (0) target = $region21
    $region20: #{categorical_policy_forward.1} parent=1 // pred_region
      _
    $region21: #{categorical_policy_forward.1} parent=1 // pred_fallthru
      _
    // Predicated region
    $region22: #{categorical_policy_forward.1} parent=1 // pred_check
      _
    $region23: #{categorical_policy_forward.1} parent=1 // pred_check_branch
      %52 = sbr.rel (0) target = $region25
    $region24: #{categorical_policy_forward.1} parent=1 // pred_region
      %53 = dma.done [#allocation3], 128
    $region25: #{categorical_policy_forward.1} parent=1 // pred_fallthru
      _
    // Predicated region
    $region26: #{categorical_policy_forward.1} parent=1 // pred_check
      _
    $region27: #{categorical_policy_forward.1} parent=1 // pred_check_branch
      %55 = sbr.rel (0) target = $region29
    $region28: #{categorical_policy_forward.1} parent=1 // pred_region
      %56 = dma.done [#allocation6], 256
    $region29: #{categorical_policy_forward.1} parent=1 // pred_fallthru
      _
    // Predicated region
    $region30: #{categorical_policy_forward.1} parent=1 // pred_check
      _
    $region31: #{categorical_policy_forward.1} parent=1 // pred_check_branch
      %58 = sbr.rel (0) target = $region33
    $region32: #{categorical_policy_forward.1} parent=1 // pred_region
      %59 = dma.done [#allocation6], 512
    $region33: #{categorical_policy_forward.1} parent=1 // pred_fallthru
      _
    %v60 = vld [vmem:[#allocation2] sm:$0xff]
    %v61 = vld [vmem:[#allocation5] sm:$0xff]
    %v62 = vld [vmem:[#allocation5 + $0x8] sm:$0xff]
    %v63 = vld [vmem:[%s2] sm:$0x1]
    %v65 = vlaneseq
    %v66 = vshrl.u32 %v65, 7
    %v67 = vsub.s32 0, %v66
    %v68 = vrot.slane %v63, %v67
    %vm70 = vcmask 130048
    %v72 = vsel %vm70, %v60, 0
    %74 = vmatprep.subr.mxu0 0.0
    %75 = vmatpush1.msra.mxu0 %v61
    %76 = vmatprep.subr.mxu0 0.0
    %77 = vmatpush1.msra.mxu0 %v62
    %78 = vmatprep.subr.mxu0 0.0
    %79 = vmatpush1.msra.mxu0 0.0
    %80 = vmatprep.subr.mxu0 0.0
    %81 = vmatpush1.msra.mxu0 0.0
    %82 = vmatprep.subr.mxu0 0.0
    %83 = vmatpush1.msra.mxu0 0.0
    %84 = vmatprep.subr.mxu0 0.0
    %85 = vmatpush1.msra.mxu0 0.0
    %86 = vmatprep.subr.mxu0 0.0
    %87 = vmatpush1.msra.mxu0 0.0
    %88 = vmatprep.subr.mxu0 0.0
    %89 = vmatpush1.msra.mxu0 0.0
    %90 = vmatprep.subr.mxu0 0.0
    %91 = vmatpush1.msra.mxu0 0.0
    %92 = vmatprep.subr.mxu0 0.0
    %93 = vmatpush1.msra.mxu0 0.0
    %94 = vmatprep.subr.mxu0 0.0
    %95 = vmatpush1.msra.mxu0 0.0
    %96 = vmatprep.subr.mxu0 0.0
    %97 = vmatpush1.msra.mxu0 0.0
    %98 = vmatprep.subr.mxu0 0.0
    %99 = vmatpush1.msra.mxu0 0.0
    %100 = vmatprep.subr.mxu0 0.0
    %101 = vmatpush1.msra.mxu0 0.0
    %102 = vmatprep.subr.mxu0 0.0
    %103 = vmatpush1.msra.mxu0 0.0
    %104 = vmatprep.subr.mxu0 0.0
    %105 = vmatpush1.msra.mxu0 0.0
    %106 = vmatprep.subr.mxu0 0.0
    %107 = vmatpush1.msra.mxu0 0.0
    %108 = vmatprep.subr.mxu0 0.0
    %109 = vmatpush1.msra.mxu0 0.0
    %110 = vmatprep.subr.mxu0 0.0
    %111 = vmatpush1.msra.mxu0 0.0
    %112 = vmatprep.subr.mxu0 0.0
    %113 = vmatpush1.msra.mxu0 0.0
    %114 = vmatprep.subr.mxu0 0.0
    %115 = vmatpush1.msra.mxu0 0.0
    %116 = vmatprep.subr.mxu0 0.0
    %117 = vmatpush1.msra.mxu0 0.0
    %118 = vmatprep.subr.mxu0 0.0
    %119 = vmatpush1.msra.mxu0 0.0
    %120 = vmatprep.subr.mxu0 0.0
    %121 = vmatpush1.msra.mxu0 0.0
    %122 = vmatprep.subr.mxu0 0.0
    %123 = vmatpush1.msra.mxu0 0.0
    %124 = vmatprep.subr.mxu0 0.0
    %125 = vmatpush1.msra.mxu0 0.0
    %126 = vmatprep.subr.mxu0 0.0
    %127 = vmatpush1.msra.mxu0 0.0
    %128 = vmatprep.subr.mxu0 0.0
    %129 = vmatpush1.msra.mxu0 0.0
    %130 = vmatprep.subr.mxu0 0.0
    %131 = vmatpush1.msra.mxu0 0.0
    %132 = vmatprep.subr.mxu0 0.0
    %133 = vmatpush1.msra.mxu0 0.0
    %134 = vmatprep.subr.mxu0 0.0
    %135 = vmatpush1.msra.mxu0 0.0
    %136 = vmatprep.subr.mxu0 0.0
    %137 = vmatpush1.msra.mxu0 0.0
    %138 = vmatprep.mubr.f32.mxu0 0.0
    %139 = vmatmul.mubr.f32.gmra.mrb[0].mxu0 %v72
    %v140 = vpop.f32.mrb[0].mxu0
    %v141 = vadd.f32 %v68, %v140
    %v142 = vpop.f32.mrb[0].mxu0
    %143 = vdwg.mxu0
    %v144 = vmax.f32 %v141, 0.0
    %v145 = vld [vmem:[#allocation7] sm:$0xff]
    %v146 = vld [vmem:[#allocation7 + $0x8] sm:$0xff]
    %v147 = vld [vmem:[#allocation7 + $0x10] sm:$0xff]
    %v148 = vld [vmem:[#allocation7 + $0x18] sm:$0xff]
    %v149 = vld [vmem:[%s4] sm:$0x1]
    %v151 = vlaneseq
    %v152 = vshrl.u32 %v151, 7
    %v153 = vsub.s32 0, %v152
    %v154 = vrot.slane %v149, %v153
    %vm156 = vcmask 261120
    %v158 = vsel %vm156, %v144, 0
    %160 = vmatprep.subr.mxu0 0.0
    %161 = vmatpush1.msra.mxu0 %v145
    %162 = vmatprep.subr.mxu0 0.0
    %163 = vmatpush1.msra.mxu0 %v146
    %164 = vmatprep.subr.mxu0 0.0
    %165 = vmatpush1.msra.mxu0 %v147
    %166 = vmatprep.subr.mxu0 0.0
    %167 = vmatpush1.msra.mxu0 %v148
    %168 = vmatprep.subr.mxu0 0.0
    %169 = vmatpush1.msra.mxu0 0.0
    %170 = vmatprep.subr.mxu0 0.0
    %171 = vmatpush1.msra.mxu0 0.0
    %172 = vmatprep.subr.mxu0 0.0
    %173 = vmatpush1.msra.mxu0 0.0
    %174 = vmatprep.subr.mxu0 0.0
    %175 = vmatpush1.msra.mxu0 0.0
    %176 = vmatprep.subr.mxu0 0.0
    %177 = vmatpush1.msra.mxu0 0.0
    %178 = vmatprep.subr.mxu0 0.0
    %179 = vmatpush1.msra.mxu0 0.0
    %180 = vmatprep.subr.mxu0 0.0
    %181 = vmatpush1.msra.mxu0 0.0
    %182 = vmatprep.subr.mxu0 0.0
    %183 = vmatpush1.msra.mxu0 0.0
    %184 = vmatprep.subr.mxu0 0.0
    %185 = vmatpush1.msra.mxu0 0.0
    %186 = vmatprep.subr.mxu0 0.0
    %187 = vmatpush1.msra.mxu0 0.0
    %188 = vmatprep.subr.mxu0 0.0
    %189 = vmatpush1.msra.mxu0 0.0
    %190 = vmatprep.subr.mxu0 0.0
    %191 = vmatpush1.msra.mxu0 0.0
    %192 = vmatprep.subr.mxu0 0.0
    %193 = vmatpush1.msra.mxu0 0.0
    %194 = vmatprep.subr.mxu0 0.0
    %195 = vmatpush1.msra.mxu0 0.0
    %196 = vmatprep.subr.mxu0 0.0
    %197 = vmatpush1.msra.mxu0 0.0
    %198 = vmatprep.subr.mxu0 0.0
    %199 = vmatpush1.msra.mxu0 0.0
    %200 = vmatprep.subr.mxu0 0.0
    %201 = vmatpush1.msra.mxu0 0.0
    %202 = vmatprep.subr.mxu0 0.0
    %203 = vmatpush1.msra.mxu0 0.0
    %204 = vmatprep.subr.mxu0 0.0
    %205 = vmatpush1.msra.mxu0 0.0
    %206 = vmatprep.subr.mxu0 0.0
    %207 = vmatpush1.msra.mxu0 0.0
    %208 = vmatprep.subr.mxu0 0.0
    %209 = vmatpush1.msra.mxu0 0.0
    %210 = vmatprep.subr.mxu0 0.0
    %211 = vmatpush1.msra.mxu0 0.0
    %212 = vmatprep.subr.mxu0 0.0
    %213 = vmatpush1.msra.mxu0 0.0
    %214 = vmatprep.subr.mxu0 0.0
    %215 = vmatpush1.msra.mxu0 0.0
    %216 = vmatprep.subr.mxu0 0.0
    %217 = vmatpush1.msra.mxu0 0.0
    %218 = vmatprep.subr.mxu0 0.0
    %219 = vmatpush1.msra.mxu0 0.0
    %220 = vmatprep.subr.mxu0 0.0
    %221 = vmatpush1.msra.mxu0 0.0
    %222 = vmatprep.subr.mxu0 0.0
    %223 = vmatpush1.msra.mxu0 0.0
    %224 = vmatprep.mubr.f32.mxu0 0.0
    %225 = vmatmul.mubr.f32.gmra.mrb[0].mxu0 %v158
    %v226 = vpop.f32.mrb[0].mxu0
    %v227 = vadd.f32 %v154, %v226
    %v228 = vpop.f32.mrb[0].mxu0
    %229 = vdwg.mxu0
    %230 = vmax.xlane.f32.xlu0 %v227
    %v231 = vpop.xlane.xlu0 %230
    %v232 = vsub.f32 %v227, %v231
    %v233 = vmul.f32 %v232, 1.442695
    %v234 = vpow.pop %v233
    %235 = vadd.xlane.f32.xlu0 %v234
    %v236 = vpop.xlane.xlu0 %235
    %v237 = vrcp.pop %v236
    %v238 = vmul.f32 %v234, %v237
    %vm239 = vcmask 64512
    %240 = vst.msk [vmem:[#allocation8] sm:$0xff] %vm239, %v238
    // Predicated region
    $region34: #{categorical_policy_forward.1} parent=1 // pred_check
      _
    $region35: #{categorical_policy_forward.1} parent=1 // pred_check_branch
      %242 = sbr.rel (0) target = $region37
    $region36: #{categorical_policy_forward.1} parent=1 // pred_region
      %s244 = ssub.s32 128, 128
      %245 = vsyncadd [#allocation4], %s244
      %s247 = sshll.u32 [#allocation8], 4
      %s248 = int_to_ptr.vmem [resolvable:$true] %s247
      %250 = dma.vmem_to_hbm [thread:$0]  %s248, 128, %s5, [#allocation4]
    $region37: #{categorical_policy_forward.1} parent=1 // pred_fallthru
      _
    // Predicated region
    $region38: #{categorical_policy_forward.1} parent=1 // pred_check
      _
    $region39: #{categorical_policy_forward.1} parent=1 // pred_check_branch
      %252 = sbr.rel (0) target = $region41
    $region40: #{categorical_policy_forward.1} parent=1 // pred_region
      %253 = dma.done [#allocation4], 128
    $region41: #{categorical_policy_forward.1} parent=1 // pred_fallthru
      _
    %254 = vsyncpa [#allocation3], 1
    %255 = vsyncpa [#allocation6], 1
    %256 = vsyncpa [#allocation4], 1

</llo_original>
